<compile_context>
chip_gen: v7x
topology: tpu7x:2x2x1
jax: 0.10.0
libtpu: 0.0.40
codegen_flags: <defaults>
</compile_context>

<pallas_src>
import jax
import jax.numpy as jnp
from jax.experimental import pallas as pl
from jax.experimental.pallas import tpu as pltpu


def _leaky(v):
    # LeakyReLU(0.2)
    return jnp.where(v >= 0.0, v, 0.2 * v)


def _bdot(a, b):
    # bf16 operands, f32 accumulation (MXU-native) — used by both kernel & reference
    return jnp.dot(a.astype(jnp.bfloat16), b.astype(jnp.bfloat16),
                   preferred_element_type=jnp.float32)


# ----------------------------- parameter packing -----------------------------

def pack_params(p, smiles_nodes, unique_classes, MIN_DIM):
    """Fuse + pack per-layer params into one bf16 weight slab and one f32 bias slab."""
    S, D = smiles_nodes, MIN_DIM
    M2, M4 = D // 2, D // 4
    a16 = lambda n: ((n + 15) // 16) * 16          # bf16 sublane-pack alignment

    R0 = 0                       # W0 (smiles rows only): (S, D)
    R1 = R0 + a16(S)             # fused stage-1 weight:  (D, M2+M4)  = [w1_ | wp1]
    R2 = R1 + a16(D)             # fused stage-2 weight:  (M2, 2*M4)  = [wp2 | wq2]
    R3 = R2 + a16(M2)            # head A (consumes t):   (M2+M4, 3)
    R4 = R3 + a16(M2 + M4)       # head B (consumes u):   (2*M4, 3)
    RT = R4 + a16(2 * M4)
    LANES = max(D, M2 + M4, 2 * M4, 8)

    bf = jnp.bfloat16
    w0 = p["w0"]                         # (S + U, D)
    w0s, w0c = w0[:S], w0[S:]
    w1f = jnp.concatenate([p["w1_"], p["wp1"]], axis=1)     # (D, M2+M4) -> [h1 | t1]
    w2f = jnp.concatenate([p["wp2"], p["wq2"]], axis=1)     # (M2, 2*M4) -> [t2 | t3]
    # block-sparse head: col0 <- t1 @ wl1, col1 <- t2 @ wl2, col2 <- t3 @ wl3
    ha = jnp.zeros((M2 + M4, 3), jnp.float32).at[M2:, 0:1].set(p["wl1"])
    hb = (jnp.zeros((2 * M4, 3), jnp.float32)
          .at[:M4, 1:2].set(p["wl2"])
          .at[M4:, 2:3].set(p["wl3"]))

    wslab = jnp.zeros((RT, LANES), bf)
    wslab = wslab.at[R0:R0 + S, :D].set(w0s.astype(bf))
    wslab = wslab.at[R1:R1 + D, :M2 + M4].set(w1f.astype(bf))
    wslab = wslab.at[R2:R2 + M2, :2 * M4].set(w2f.astype(bf))
    wslab = wslab.at[R3:R3 + M2 + M4, :3].set(ha.astype(bf))
    wslab = wslab.at[R4:R4 + 2 * M4, :3].set(hb.astype(bf))

    b1f = jnp.concatenate([p["b1_"], p["bp1"]], axis=1)     # (1, M2+M4)
    b2f = jnp.concatenate([p["bp2"], p["bq2"]], axis=1)     # (1, 2*M4)
    bh = jnp.concatenate([p["bl1"], p["bl2"], p["bl3"]], axis=1)   # (1, 3)
    # each bias row sits lane-0-aligned in its own 8-sublane f32 tile (no lane shifts)
    bslab = jnp.zeros((24, LANES), jnp.float32)
    bslab = bslab.at[0:1, :M2 + M4].set(b1f)
    bslab = bslab.at[8:9, :2 * M4].set(b2f)
    bslab = bslab.at[16:17, :3].set(bh)

    # class-embedding contribution to layer 0, folded with its bias:
    # emb_proj_b[k] = emb[k] @ W0_class + b0   (gathered per-row at call time)
    emb_proj_b = _bdot(p["emb"], w0c) + p["b0"]              # (U, D) f32

    return {"wslab": wslab, "bslab": bslab, "emb_proj_b": emb_proj_b,
            "dims": (S, D, M2, M4), "rows": (R0, R1, R2, R3, R4)}


# --------------------------------- the kernel --------------------------------

def make_discriminator(packed):
    S, D, M2, M4 = packed["dims"]
    R0, R1, R2, R3, R4 = packed["rows"]
    wslab, bslab, emb_proj_b = packed["wslab"], packed["bslab"], packed["emb_proj_b"]
    RT, LANES = wslab.shape
    RB = bslab.shape[0]

    def kernel(x_ref, e_ref, w_ref, b_ref, o_ref):
        x = x_ref[...]                                          # (b, S) bf16
        # smile_input: Conv1d -> LeakyReLU (class contribution + bias pre-folded)
        h0 = _leaky(jnp.dot(x, w_ref[R0:R0 + S, :D],
                            preferred_element_type=jnp.float32) + e_ref[...])
        # fused parallel1_ / parallel_1-conv:  t = [h1 | t1]
        t = _leaky(jnp.dot(h0.astype(jnp.bfloat16), w_ref[R1:R1 + D, :M2 + M4],
                           preferred_element_type=jnp.float32) + b_ref[0:1, :M2 + M4])
        t_bf = t.astype(jnp.bfloat16)
        # fused parallel_2-conv / parallel2_:  u = [t2 | t3]
        u = _leaky(jnp.dot(t_bf[:, :M2], w_ref[R2:R2 + M2, :2 * M4],
                           preferred_element_type=jnp.float32) + b_ref[8:9, :2 * M4])
        # block-sparse head -> (b, 3) logits, sigmoid, store
        logits = (jnp.dot(t_bf, w_ref[R3:R3 + M2 + M4, :3],
                          preferred_element_type=jnp.float32)
                  + jnp.dot(u.astype(jnp.bfloat16), w_ref[R4:R4 + 2 * M4, :3],
                            preferred_element_type=jnp.float32)
                  + b_ref[16:17, :3])
        o_ref[...] = jax.nn.sigmoid(logits)

    BT = 256   # batch tile for the large-batch (multi-TensorCore) path

    def forward(x, c):
        B = x.shape[0]
        xb = x.reshape(B, S).astype(jnp.bfloat16)
        e = emb_proj_b[c]                                       # (B, D) f32 row gather

        if B % BT == 0 and B // BT >= 2:
            # batch-tiled grid: activations stream per tile, param slabs stay
            # VMEM-resident (constant index_map); grid axis sharded across cores.
            out = pl.pallas_call(
                kernel,
                out_shape=jax.ShapeDtypeStruct((B, 3), jnp.float32),
                grid=(B // BT,),
                in_specs=[
                    pl.BlockSpec((BT, S), lambda i: (i, 0)),
                    pl.BlockSpec((BT, D), lambda i: (i, 0)),
                    pl.BlockSpec((RT, LANES), lambda i: (0, 0)),
                    pl.BlockSpec((RB, LANES), lambda i: (0, 0)),
                ],
                out_specs=pl.BlockSpec((BT, 3), lambda i: (i, 0)),
                compiler_params=pltpu.CompilerParams(
                    dimension_semantics=("parallel",)),
            )(xb, e, wslab, bslab)
        else:
            # tiny batch: gridless, fixed-overhead bound — keep it to one program
            out = pl.pallas_call(
                kernel,
                out_shape=jax.ShapeDtypeStruct((B, 3), jnp.float32),
                in_specs=[pl.BlockSpec(memory_space=pltpu.MemorySpace.VMEM)] * 4,
                out_specs=pl.BlockSpec(memory_space=pltpu.MemorySpace.VMEM),
            )(xb, e, wslab, bslab)
        return jnp.squeeze(out)                                 # out.squeeze()

    return forward


# ----------------------- deterministic parameter init ------------------------

def _spectral_normalize(w):
    # spectral_norm: divide by largest singular value (converged power iteration)
    sigma = jnp.linalg.norm(w, ord=2)
    return w / sigma


def init_params(key, smiles_nodes, unique_classes, MIN_DIM):
    M2, M4 = MIN_DIM // 2, MIN_DIM // 4
    Cin = smiles_nodes + unique_classes
    ks = jax.random.split(key, 16)

    def mat(k, out_c, in_c):
        # stored torch-style (out, in), spectral-normalized, then transposed to (in, out)
        w = jax.random.normal(k, (out_c, in_c), jnp.float32) * 0.2
        return _spectral_normalize(w).T

    def bias(k, n):
        return (jax.random.uniform(k, (1, n), jnp.float32) - 0.5) * 0.1

    return {
        "emb": jax.random.normal(ks[0], (unique_classes, unique_classes), jnp.float32),
        # smile_input: Conv1d(Cin, MIN_DIM, k=1)
        "w0":  mat(ks[1], MIN_DIM, Cin),  "b0":  bias(ks[2], MIN_DIM),
        # parallel_1: Conv1d(MIN_DIM, M4) + Linear(M4, 1)
        "wp1": mat(ks[3], M4, MIN_DIM),   "bp1": bias(ks[4], M4),
        "wl1": mat(ks[5], 1, M4),         "bl1": bias(ks[6], 1),
        # parallel1_: Conv1d(MIN_DIM, M2)
        "w1_": mat(ks[7], M2, MIN_DIM),   "b1_": bias(ks[8], M2),
        # parallel_2: Conv1d(M2, M4) + Linear(M4, 1)
        "wp2": mat(ks[9], M4, M2),        "bp2": bias(ks[10], M4),
        "wl2": mat(ks[11], 1, M4),        "bl2": bias(ks[12], 1),
        # parallel2_: Conv1d(M2, M4)
        "wq2": mat(ks[13], M4, M2),       "bq2": bias(ks[14], M4),
        # parallel_3: Linear(M4, 1)
        "wl3": mat(ks[15], 1, M4),        "bl3": jnp.zeros((1, 1), jnp.float32),
    }


def _reference_forward(x, c, params):
    """Pure-JAX reference mirroring the PyTorch forward (eval mode, bf16 MXU math)."""
    B = x.shape[0]
    xc = jnp.concatenate([x.reshape(B, -1).astype(jnp.float32), params["emb"][c]], axis=1)
    h0 = _leaky(_bdot(xc, params["w0"]) + params["b0"])
    x_1 = _bdot(_leaky(_bdot(h0, params["wp1"]) + params["bp1"]), params["wl1"]) + params["bl1"]
    h1 = _leaky(_bdot(h0, params["w1_"]) + params["b1_"])
    x_2 = _bdot(_leaky(_bdot(h1, params["wp2"]) + params["bp2"]), params["wl2"]) + params["bl2"]
    t3 = _leaky(_bdot(h1, params["wq2"]) + params["bq2"])
    x_3 = _bdot(t3, params["wl3"]) + params["bl3"]
    return jnp.squeeze(jax.nn.sigmoid(jnp.concatenate([x_1, x_2, x_3], axis=1)))


if __name__ == "__main__":
    smiles_nodes = 24
    unique_classes = 8
    MIN_DIM = 32
    B = 4

    key = jax.random.PRNGKey(0)
    k_x, k_c, k_p, k_x2, k_c2 = jax.random.split(key, 5)

    params = init_params(k_p, smiles_nodes, unique_classes, MIN_DIM)
    packed = pack_params(params, smiles_nodes, unique_classes, MIN_DIM)
    forward = make_discriminator(packed)

    # --- tiny-batch (gridless, single-program) path ---
    x = jax.random.normal(k_x, (B, smiles_nodes), jnp.float32)
    c = jax.random.randint(k_c, (B,), 0, unique_classes, jnp.int32)
    out = jax.block_until_ready(forward(x, c))
    ref = _reference_forward(x, c, params)
    assert out.shape == (B, 3), out.shape
    assert jnp.allclose(out, ref, atol=1e-3, rtol=1e-3), (out, ref)

    # --- large-batch (batch-tiled, megacore "parallel") path ---
    B2 = 512
    x2 = jax.random.normal(k_x2, (B2, smiles_nodes), jnp.float32)
    c2 = jax.random.randint(k_c2, (B2,), 0, unique_classes, jnp.int32)
    out2 = jax.block_until_ready(forward(x2, c2))
    ref2 = _reference_forward(x2, c2, params)
    assert out2.shape == (B2, 3), out2.shape
    assert jnp.allclose(out2, ref2, atol=1e-3, rtol=1e-3), (out2, ref2)

    print("KERNEL_OK")
</pallas_src>

<mosaic_0001>
module attributes {stable_mosaic.version = 11 : i64} {
  func.func @kernel(%arg0: memref<4x24xbf16, #tpu.memory_space<vmem>>, %arg1: memref<4x32xf32, #tpu.memory_space<vmem>>, %arg2: memref<128x32xbf16, #tpu.memory_space<vmem>>, %arg3: memref<24x32xf32, #tpu.memory_space<vmem>>, %arg4: memref<4x3xf32, #tpu.memory_space<vmem>>) attributes {dimension_semantics = [], scalar_prefetch = 0 : i64, scratch_operands = 0 : i64, tpu.core_type = #tpu.core_type<tc>} {
    %c0 = arith.constant 0 : index
    %c0_0 = arith.constant 0 : index
    %0 = vector.load %arg0[%c0, %c0_0] : memref<4x24xbf16, #tpu.memory_space<vmem>>, vector<4x24xbf16>
    %c0_1 = arith.constant 0 : index
    %c0_2 = arith.constant 0 : index
    %1 = vector.load %arg2[%c0_1, %c0_2] : memref<128x32xbf16, #tpu.memory_space<vmem>>, vector<24x32xbf16>
    %cst = arith.constant dense<0.000000e+00> : vector<4x32xf32>
    %2 = tpu.matmul %0, %1, %cst {dimension_numbers = #tpu.dot_dimension_numbers<[1], [0], [0], [1], [0, 0, 1, 1], [], []>} : vector<4x24xbf16>, vector<24x32xbf16>, vector<4x32xf32> -> vector<4x32xf32>
    %c0_3 = arith.constant 0 : index
    %c0_4 = arith.constant 0 : index
    %3 = vector.load %arg1[%c0_3, %c0_4] : memref<4x32xf32, #tpu.memory_space<vmem>>, vector<4x32xf32>
    %4 = arith.addf %2, %3 : vector<4x32xf32>
    %cst_5 = arith.constant 0.000000e+00 : f32
    %5 = vector.broadcast %cst_5 : f32 to vector<4x32xf32>
    %6 = arith.cmpf oge, %4, %5 : vector<4x32xf32>
    %cst_6 = arith.constant 2.000000e-01 : f32
    %7 = vector.broadcast %cst_6 : f32 to vector<4x32xf32>
    %8 = arith.mulf %7, %4 : vector<4x32xf32>
    %9 = arith.select %6, %4, %8 : vector<4x32xi1>, vector<4x32xf32>
    %10 = arith.truncf %9 : vector<4x32xf32> to vector<4x32xbf16>
    %c32 = arith.constant 32 : index
    %c0_7 = arith.constant 0 : index
    %11 = vector.load %arg2[%c32, %c0_7] : memref<128x32xbf16, #tpu.memory_space<vmem>>, vector<32x24xbf16>
    %cst_8 = arith.constant dense<0.000000e+00> : vector<4x24xf32>
    %12 = tpu.matmul %10, %11, %cst_8 {dimension_numbers = #tpu.dot_dimension_numbers<[1], [0], [0], [1], [0, 0, 1, 1], [], []>} : vector<4x32xbf16>, vector<32x24xbf16>, vector<4x24xf32> -> vector<4x24xf32>
    %c0_9 = arith.constant 0 : index
    %c0_10 = arith.constant 0 : index
    %13 = vector.load %arg3[%c0_9, %c0_10] : memref<24x32xf32, #tpu.memory_space<vmem>>, vector<1x24xf32>
    %14 = vector.broadcast %13 : vector<1x24xf32> to vector<4x24xf32>
    %15 = arith.addf %12, %14 : vector<4x24xf32>
    %cst_11 = arith.constant 0.000000e+00 : f32
    %16 = vector.broadcast %cst_11 : f32 to vector<4x24xf32>
    %17 = arith.cmpf oge, %15, %16 : vector<4x24xf32>
    %cst_12 = arith.constant 2.000000e-01 : f32
    %18 = vector.broadcast %cst_12 : f32 to vector<4x24xf32>
    %19 = arith.mulf %18, %15 : vector<4x24xf32>
    %20 = arith.select %17, %15, %19 : vector<4x24xi1>, vector<4x24xf32>
    %21 = arith.truncf %20 : vector<4x24xf32> to vector<4x24xbf16>
    %22 = vector.extract_strided_slice %21 {offsets = [0, 0], sizes = [4, 16], strides = [1, 1]} : vector<4x24xbf16> to vector<4x16xbf16>
    %c64 = arith.constant 64 : index
    %c0_13 = arith.constant 0 : index
    %23 = vector.load %arg2[%c64, %c0_13] : memref<128x32xbf16, #tpu.memory_space<vmem>>, vector<16x16xbf16>
    %cst_14 = arith.constant dense<0.000000e+00> : vector<4x16xf32>
    %24 = tpu.matmul %22, %23, %cst_14 {dimension_numbers = #tpu.dot_dimension_numbers<[1], [0], [0], [1], [0, 0, 1, 1], [], []>} : vector<4x16xbf16>, vector<16x16xbf16>, vector<4x16xf32> -> vector<4x16xf32>
    %c8 = arith.constant 8 : index
    %c0_15 = arith.constant 0 : index
    %25 = vector.load %arg3[%c8, %c0_15] : memref<24x32xf32, #tpu.memory_space<vmem>>, vector<1x16xf32>
    %26 = vector.broadcast %25 : vector<1x16xf32> to vector<4x16xf32>
    %27 = arith.addf %24, %26 : vector<4x16xf32>
    %cst_16 = arith.constant 0.000000e+00 : f32
    %28 = vector.broadcast %cst_16 : f32 to vector<4x16xf32>
    %29 = arith.cmpf oge, %27, %28 : vector<4x16xf32>
    %cst_17 = arith.constant 2.000000e-01 : f32
    %30 = vector.broadcast %cst_17 : f32 to vector<4x16xf32>
    %31 = arith.mulf %30, %27 : vector<4x16xf32>
    %32 = arith.select %29, %27, %31 : vector<4x16xi1>, vector<4x16xf32>
    %c80 = arith.constant 80 : index
    %c0_18 = arith.constant 0 : index
    %33 = vector.load %arg2[%c80, %c0_18] : memref<128x32xbf16, #tpu.memory_space<vmem>>, vector<24x3xbf16>
    %cst_19 = arith.constant dense<0.000000e+00> : vector<4x3xf32>
    %34 = tpu.matmul %21, %33, %cst_19 {dimension_numbers = #tpu.dot_dimension_numbers<[1], [0], [0], [1], [0, 0, 1, 1], [], []>} : vector<4x24xbf16>, vector<24x3xbf16>, vector<4x3xf32> -> vector<4x3xf32>
    %35 = arith.truncf %32 : vector<4x16xf32> to vector<4x16xbf16>
    %c112 = arith.constant 112 : index
    %c0_20 = arith.constant 0 : index
    %36 = vector.load %arg2[%c112, %c0_20] : memref<128x32xbf16, #tpu.memory_space<vmem>>, vector<16x3xbf16>
    %cst_21 = arith.constant dense<0.000000e+00> : vector<4x3xf32>
    %37 = tpu.matmul %35, %36, %cst_21 {dimension_numbers = #tpu.dot_dimension_numbers<[1], [0], [0], [1], [0, 0, 1, 1], [], []>} : vector<4x16xbf16>, vector<16x3xbf16>, vector<4x3xf32> -> vector<4x3xf32>
    %38 = arith.addf %34, %37 : vector<4x3xf32>
    %c16 = arith.constant 16 : index
    %c0_22 = arith.constant 0 : index
    %39 = vector.load %arg3[%c16, %c0_22] : memref<24x32xf32, #tpu.memory_space<vmem>>, vector<1x3xf32>
    %40 = vector.broadcast %39 : vector<1x3xf32> to vector<4x3xf32>
    %41 = arith.addf %38, %40 : vector<4x3xf32>
    %42 = arith.negf %41 : vector<4x3xf32>
    %43 = math.exp %42 : vector<4x3xf32>
    %cst_23 = arith.constant 1.000000e+00 : f32
    %44 = vector.broadcast %cst_23 : f32 to vector<4x3xf32>
    %45 = arith.addf %44, %43 : vector<4x3xf32>
    %46 = arith.divf %44, %45 : vector<4x3xf32>
    %c0_24 = arith.constant 0 : index
    %c0_25 = arith.constant 0 : index
    %47 = vector.load %arg4[%c0_24, %c0_25] : memref<4x3xf32, #tpu.memory_space<vmem>>, vector<4x3xf32>
    tpu.vector_store %arg4[%c0_24, %c0_25], %46 {strides = array<i32>} : memref<4x3xf32, #tpu.memory_space<vmem>>, vector<4x3xf32>,
    return
  }
}

</mosaic_0001>

<llo_original>
// kernel: tpu_custom_call.1
$region0: #{tpu_custom_call.1}
  #allocation0 [shape = 'u32[]', space=smem, size = 0x4, offset = 0x4, fixed_abs, tag = 'smem constant byte address 0x4 - core index']
  #allocation1 [shape = 'u32[144,128]{1,0:T(1,128)}', space=vmem, size = 0x12000, scoped, tag = 'internal scratch']
  %s0 = inlined_call_operand.vmem [shape: bf16[4,24], index: 0, kind: input, shape index: {}]
  %s1 = inlined_call_operand.vmem [shape: f32[4,32], index: 1, kind: input, shape index: {}]
  %s2 = inlined_call_operand.vmem [shape: bf16[128,32], index: 2, kind: input, shape index: {}]
  %s3 = inlined_call_operand.vmem [shape: f32[24,32], index: 3, kind: input, shape index: {}]
  %s4 = inlined_call_operand.hbm [shape: f32[4,3], index: 4, kind: output, shape index: {}]
  %s5 = sld [smem:[#allocation0]]
  $region26: #{tpu_custom_call.1} parent=0
    _
  %s7 = ssub.s32 1, %s5
  %s8 = scalar_select 0, %s7, %s5
  $region1: #{tpu_custom_call.1} parent=0
    #allocation2 [shape = 'u8[2048]{0}', space=vmem, size = 0x800, scoped, tag = 'output window, operand 0, single buffered']
    #allocation3 [shape = 's32[1]{0}', space=sflag, size = 0x4, scoped, tag = 'scoped memory for tpu_custom_call.1']
    %9 = vsyncpa [#allocation3], 0
    // Predicated region
    $region2: #{tpu_custom_call.1} parent=1 // pred_check
      _
    $region3: #{tpu_custom_call.1} parent=1 // pred_check_branch
      %11 = sbr.rel (0) target = $region5
    $region4: #{tpu_custom_call.1} parent=1 // pred_region
      _
    $region5: #{tpu_custom_call.1} parent=1 // pred_fallthru
      _
    // Predicated region
    $region6: #{tpu_custom_call.1} parent=1 // pred_check
      _
    $region7: #{tpu_custom_call.1} parent=1 // pred_check_branch
      %13 = sbr.rel (0) target = $region9
    $region8: #{tpu_custom_call.1} parent=1 // pred_region
      _
    $region9: #{tpu_custom_call.1} parent=1 // pred_fallthru
      _
    // Predicated region
    $region10: #{tpu_custom_call.1} parent=1 // pred_check
      _
    $region11: #{tpu_custom_call.1} parent=1 // pred_check_branch
      %15 = sbr.rel (0) target = $region13
    $region12: #{tpu_custom_call.1} parent=1 // pred_region
      _
    $region13: #{tpu_custom_call.1} parent=1 // pred_fallthru
      _
    // Predicated region
    $region14: #{tpu_custom_call.1} parent=1 // pred_check
      _
    $region15: #{tpu_custom_call.1} parent=1 // pred_check_branch
      %17 = sbr.rel (0) target = $region17
    $region16: #{tpu_custom_call.1} parent=1 // pred_region
      _
    $region17: #{tpu_custom_call.1} parent=1 // pred_fallthru
      _
    %v19 = vld [vmem:[%s0] sm:$0x3]
    %v20 = vld [vmem:[%s2] sm:$0xf]
    %v21 = vld [vmem:[%s2 + $0x4] sm:$0xf]
    %v22 = vld [vmem:[%s2 + $0x8] sm:$0xf]
    %v23 = vld [vmem:[%s1] sm:$0xf]
    %v27 = vunpack.c.l.b16 %v20
    %v28 = vunpack.c.l.b16 %v21
    %v29 = vunpack.c.l.b16 %v22
    %v30 = vpack.c.b16 %v28, %v27
    %v31 = vpack.c.b16 %v29, %v29
    %vm33 = vcmask 195584
    %v35 = vsel %vm33, %v19, 0
    %vm37 = vcmask 1043456
    %v39 = vsel %vm37, %v31, 0
    %41 = vmatprep.subr.bf16.mxu0 0
    %42 = vmatpush1.bf16.msra.mxu0 %v30
    %43 = vmatprep.subr.bf16.mxu0 0
    %44 = vmatpush1.bf16.msra.mxu0 %v39
    %45 = vmatprep.subr.bf16.mxu0 0
    %46 = vmatpush1.bf16.msra.mxu0 0
    %47 = vmatprep.subr.bf16.mxu0 0
    %48 = vmatpush1.bf16.msra.mxu0 0
    %49 = vmatprep.subr.bf16.mxu0 0
    %50 = vmatpush1.bf16.msra.mxu0 0
    %51 = vmatprep.subr.bf16.mxu0 0
    %52 = vmatpush1.bf16.msra.mxu0 0
    %53 = vmatprep.subr.bf16.mxu0 0
    %54 = vmatpush1.bf16.msra.mxu0 0
    %55 = vmatprep.subr.bf16.mxu0 0
    %56 = vmatpush1.bf16.msra.mxu0 0
    %57 = vmatprep.subr.bf16.mxu0 0
    %58 = vmatpush1.bf16.msra.mxu0 0
    %59 = vmatprep.subr.bf16.mxu0 0
    %60 = vmatpush1.bf16.msra.mxu0 0
    %61 = vmatprep.subr.bf16.mxu0 0
    %62 = vmatpush1.bf16.msra.mxu0 0
    %63 = vmatprep.subr.bf16.mxu0 0
    %64 = vmatpush1.bf16.msra.mxu0 0
    %65 = vmatprep.subr.bf16.mxu0 0
    %66 = vmatpush1.bf16.msra.mxu0 0
    %67 = vmatprep.subr.bf16.mxu0 0
    %68 = vmatpush1.bf16.msra.mxu0 0
    %69 = vmatprep.subr.bf16.mxu0 0
    %70 = vmatpush1.bf16.msra.mxu0 0
    %71 = vmatprep.subr.bf16.mxu0 0
    %72 = vmatpush1.bf16.msra.mxu0 0
    %73 = vmatprep.mubr.bf16.mxu0 0
    %74 = vmatmul.mubr.bf16.gmra.mrb[0].mxu0 %v35
    %v75 = vpop.f32.mrb[0].mxu0
    %v76 = vadd.f32 %v23, %v75
    %v77 = vpop.f32.mrb[0].mxu0
    %v78 = vpop.f32.mrb[0].mxu0
    %v79 = vpop.f32.mrb[0].mxu0
    %80 = vdwg.mxu0
    %vm81 = vcmp.ge.f32.partialorder %v76, 0.0
    %v82 = vmul.f32 %v76, 0.2
    %v83 = vsel %vm81, %v76, %v82
    %v84 = vpack.c.bf16 %v83, %v83
    %v85 = vld [vmem:[%s2 + $0x10] sm:$0xf]
    %v86 = vld [vmem:[%s2 + $0x14] sm:$0xf]
    %v87 = vld [vmem:[%s2 + $0x18] sm:$0xf]
    %v88 = vld [vmem:[%s2 + $0x1c] sm:$0xf]
    %v89 = vld [vmem:[%s3] sm:$0x1]
    %v90 = vlaneseq
    %v91 = vshrl.u32 %v90, 7
    %v92 = vsub.s32 0, %v91
    %v93 = vrot.slane %v89, %v92
    %v98 = vunpack.c.l.b16 %v85
    %v99 = vunpack.c.l.b16 %v86
    %v100 = vunpack.c.l.b16 %v87
    %v101 = vunpack.c.l.b16 %v88
    %v102 = vpack.c.b16 %v99, %v98
    %v103 = vpack.c.b16 %v101, %v100
    %vm106 = vcmask 261120
    %v108 = vsel %vm106, %v84, 0
    %110 = vmatprep.subr.bf16.mxu0 0
    %111 = vmatpush1.bf16.msra.mxu0 %v102
    %112 = vmatprep.subr.bf16.mxu0 0
    %113 = vmatpush1.bf16.msra.mxu0 %v103
    %114 = vmatprep.subr.bf16.mxu0 0
    %115 = vmatpush1.bf16.msra.mxu0 0
    %116 = vmatprep.subr.bf16.mxu0 0
    %117 = vmatpush1.bf16.msra.mxu0 0
    %118 = vmatprep.subr.bf16.mxu0 0
    %119 = vmatpush1.bf16.msra.mxu0 0
    %120 = vmatprep.subr.bf16.mxu0 0
    %121 = vmatpush1.bf16.msra.mxu0 0
    %122 = vmatprep.subr.bf16.mxu0 0
    %123 = vmatpush1.bf16.msra.mxu0 0
    %124 = vmatprep.subr.bf16.mxu0 0
    %125 = vmatpush1.bf16.msra.mxu0 0
    %126 = vmatprep.subr.bf16.mxu0 0
    %127 = vmatpush1.bf16.msra.mxu0 0
    %128 = vmatprep.subr.bf16.mxu0 0
    %129 = vmatpush1.bf16.msra.mxu0 0
    %130 = vmatprep.subr.bf16.mxu0 0
    %131 = vmatpush1.bf16.msra.mxu0 0
    %132 = vmatprep.subr.bf16.mxu0 0
    %133 = vmatpush1.bf16.msra.mxu0 0
    %134 = vmatprep.subr.bf16.mxu0 0
    %135 = vmatpush1.bf16.msra.mxu0 0
    %136 = vmatprep.subr.bf16.mxu0 0
    %137 = vmatpush1.bf16.msra.mxu0 0
    %138 = vmatprep.subr.bf16.mxu0 0
    %139 = vmatpush1.bf16.msra.mxu0 0
    %140 = vmatprep.subr.bf16.mxu0 0
    %141 = vmatpush1.bf16.msra.mxu0 0
    %142 = vmatprep.mubr.bf16.mxu0 0
    %143 = vmatmul.mubr.bf16.gmra.mrb[0].mxu0 %v108
    %v144 = vpop.f32.mrb[0].mxu0
    %v145 = vadd.f32 %v93, %v144
    %v146 = vpop.f32.mrb[0].mxu0
    %v147 = vpop.f32.mrb[0].mxu0
    %v148 = vpop.f32.mrb[0].mxu0
    %149 = vdwg.mxu0
    %vm150 = vcmp.ge.f32.partialorder %v145, 0.0
    %v151 = vmul.f32 %v145, 0.2
    %v152 = vsel %vm150, %v145, %v151
    %v153 = vpack.c.bf16 %v152, %v152
    %v154 = vld [vmem:[%s2 + $0x20] sm:$0xf]
    %v155 = vld [vmem:[%s2 + $0x24] sm:$0xf]
    %v156 = vld [vmem:[%s3 + $0x8] sm:$0x1]
    %v157 = vlaneseq
    %v158 = vshrl.u32 %v157, 7
    %v159 = vsub.s32 0, %v158
    %v160 = vrot.slane %v156, %v159
    %v163 = vunpack.c.l.b16 %v154
    %v164 = vunpack.c.l.b16 %v155
    %v165 = vpack.c.b16 %v164, %v163
    %vm167 = vcmask 130048
    %v169 = vsel %vm167, %v153, 0
    %171 = vmatprep.subr.bf16.mxu0 0
    %172 = vmatpush1.bf16.msra.mxu0 %v165
    %173 = vmatprep.subr.bf16.mxu0 0
    %174 = vmatpush1.bf16.msra.mxu0 0
    %175 = vmatprep.subr.bf16.mxu0 0
    %176 = vmatpush1.bf16.msra.mxu0 0
    %177 = vmatprep.subr.bf16.mxu0 0
    %178 = vmatpush1.bf16.msra.mxu0 0
    %179 = vmatprep.subr.bf16.mxu0 0
    %180 = vmatpush1.bf16.msra.mxu0 0
    %181 = vmatprep.subr.bf16.mxu0 0
    %182 = vmatpush1.bf16.msra.mxu0 0
    %183 = vmatprep.subr.bf16.mxu0 0
    %184 = vmatpush1.bf16.msra.mxu0 0
    %185 = vmatprep.subr.bf16.mxu0 0
    %186 = vmatpush1.bf16.msra.mxu0 0
    %187 = vmatprep.subr.bf16.mxu0 0
    %188 = vmatpush1.bf16.msra.mxu0 0
    %189 = vmatprep.subr.bf16.mxu0 0
    %190 = vmatpush1.bf16.msra.mxu0 0
    %191 = vmatprep.subr.bf16.mxu0 0
    %192 = vmatpush1.bf16.msra.mxu0 0
    %193 = vmatprep.subr.bf16.mxu0 0
    %194 = vmatpush1.bf16.msra.mxu0 0
    %195 = vmatprep.subr.bf16.mxu0 0
    %196 = vmatpush1.bf16.msra.mxu0 0
    %197 = vmatprep.subr.bf16.mxu0 0
    %198 = vmatpush1.bf16.msra.mxu0 0
    %199 = vmatprep.subr.bf16.mxu0 0
    %200 = vmatpush1.bf16.msra.mxu0 0
    %201 = vmatprep.subr.bf16.mxu0 0
    %202 = vmatpush1.bf16.msra.mxu0 0
    %203 = vmatprep.mubr.bf16.mxu0 0
    %204 = vmatmul.mubr.bf16.gmra.mrb[0].mxu0 %v169
    %v205 = vpop.f32.mrb[0].mxu0
    %v206 = vadd.f32 %v160, %v205
    %v207 = vpop.f32.mrb[0].mxu0
    %v208 = vpop.f32.mrb[0].mxu0
    %v209 = vpop.f32.mrb[0].mxu0
    %210 = vdwg.mxu0
    %vm211 = vcmp.ge.f32.partialorder %v206, 0.0
    %v212 = vmul.f32 %v206, 0.2
    %v213 = vsel %vm211, %v206, %v212
    %v214 = vld [vmem:[%s2 + $0x28] sm:$0xf]
    %v215 = vld [vmem:[%s2 + $0x2c] sm:$0xf]
    %v216 = vld [vmem:[%s2 + $0x30] sm:$0xf]
    %v217 = vpack.c.bf16 %v213, %v213
    %v218 = vld [vmem:[%s2 + $0x38] sm:$0xf]
    %v219 = vld [vmem:[%s2 + $0x3c] sm:$0xf]
    %v222 = vunpack.c.l.b16 %v218
    %v223 = vunpack.c.l.b16 %v219
    %v224 = vpack.c.b16 %v223, %v222
    %v227 = vsel %vm167, %v217, 0
    %229 = vmatprep.subr.bf16.mxu0 0
    %230 = vmatpush1.bf16.msra.mxu0 %v224
    %231 = vmatprep.subr.bf16.mxu0 0
    %232 = vmatpush1.bf16.msra.mxu0 0
    %233 = vmatprep.subr.bf16.mxu0 0
    %234 = vmatpush1.bf16.msra.mxu0 0
    %235 = vmatprep.subr.bf16.mxu0 0
    %236 = vmatpush1.bf16.msra.mxu0 0
    %237 = vmatprep.subr.bf16.mxu0 0
    %238 = vmatpush1.bf16.msra.mxu0 0
    %239 = vmatprep.subr.bf16.mxu0 0
    %240 = vmatpush1.bf16.msra.mxu0 0
    %241 = vmatprep.subr.bf16.mxu0 0
    %242 = vmatpush1.bf16.msra.mxu0 0
    %243 = vmatprep.subr.bf16.mxu0 0
    %244 = vmatpush1.bf16.msra.mxu0 0
    %245 = vmatprep.subr.bf16.mxu0 0
    %246 = vmatpush1.bf16.msra.mxu0 0
    %247 = vmatprep.subr.bf16.mxu0 0
    %248 = vmatpush1.bf16.msra.mxu0 0
    %249 = vmatprep.subr.bf16.mxu0 0
    %250 = vmatpush1.bf16.msra.mxu0 0
    %251 = vmatprep.subr.bf16.mxu0 0
    %252 = vmatpush1.bf16.msra.mxu0 0
    %253 = vmatprep.subr.bf16.mxu0 0
    %254 = vmatpush1.bf16.msra.mxu0 0
    %255 = vmatprep.subr.bf16.mxu0 0
    %256 = vmatpush1.bf16.msra.mxu0 0
    %257 = vmatprep.subr.bf16.mxu0 0
    %258 = vmatpush1.bf16.msra.mxu0 0
    %259 = vmatprep.subr.bf16.mxu0 0
    %260 = vmatpush1.bf16.msra.mxu0 0
    %261 = vmatprep.mubr.bf16.mxu0 0
    %262 = vmatmul.mubr.bf16.gmra.mrb[0].mxu0 %v227
    %v263 = vpop.f32.mrb[0].mxu0
    %v264 = vadd.f32 0.0, %v263
    %v265 = vpop.f32.mrb[0].mxu0
    %v266 = vpop.f32.mrb[0].mxu0
    %v267 = vpop.f32.mrb[0].mxu0
    %268 = vdwg.mxu0
    %v272 = vunpack.c.l.b16 %v214
    %v273 = vunpack.c.l.b16 %v215
    %v274 = vunpack.c.l.b16 %v216
    %v275 = vpack.c.b16 %v273, %v272
    %v276 = vpack.c.b16 %v274, %v274
    %v278 = vsel %vm33, %v153, 0
    %v281 = vsel %vm37, %v276, 0
    %283 = vmatprep.subr.bf16.mxu0 0
    %284 = vmatpush1.bf16.msra.mxu0 %v275
    %285 = vmatprep.subr.bf16.mxu0 0
    %286 = vmatpush1.bf16.msra.mxu0 %v281
    %287 = vmatprep.subr.bf16.mxu0 0
    %288 = vmatpush1.bf16.msra.mxu0 0
    %289 = vmatprep.subr.bf16.mxu0 0
    %290 = vmatpush1.bf16.msra.mxu0 0
    %291 = vmatprep.subr.bf16.mxu0 0
    %292 = vmatpush1.bf16.msra.mxu0 0
    %293 = vmatprep.subr.bf16.mxu0 0
    %294 = vmatpush1.bf16.msra.mxu0 0
    %295 = vmatprep.subr.bf16.mxu0 0
    %296 = vmatpush1.bf16.msra.mxu0 0
    %297 = vmatprep.subr.bf16.mxu0 0
    %298 = vmatpush1.bf16.msra.mxu0 0
    %299 = vmatprep.subr.bf16.mxu0 0
    %300 = vmatpush1.bf16.msra.mxu0 0
    %301 = vmatprep.subr.bf16.mxu0 0
    %302 = vmatpush1.bf16.msra.mxu0 0
    %303 = vmatprep.subr.bf16.mxu0 0
    %304 = vmatpush1.bf16.msra.mxu0 0
    %305 = vmatprep.subr.bf16.mxu0 0
    %306 = vmatpush1.bf16.msra.mxu0 0
    %307 = vmatprep.subr.bf16.mxu0 0
    %308 = vmatpush1.bf16.msra.mxu0 0
    %309 = vmatprep.subr.bf16.mxu0 0
    %310 = vmatpush1.bf16.msra.mxu0 0
    %311 = vmatprep.subr.bf16.mxu0 0
    %312 = vmatpush1.bf16.msra.mxu0 0
    %313 = vmatprep.subr.bf16.mxu0 0
    %314 = vmatpush1.bf16.msra.mxu0 0
    %315 = vmatprep.mubr.bf16.mxu0 0
    %316 = vmatmul.mubr.bf16.gmra.mrb[0].mxu0 %v278
    %v317 = vpop.f32.mrb[0].mxu0
    %v318 = vadd.f32 %v264, %v317
    %v319 = vpop.f32.mrb[0].mxu0
    %v320 = vpop.f32.mrb[0].mxu0
    %v321 = vpop.f32.mrb[0].mxu0
    %322 = vdwg.mxu0
    %v323 = vld [vmem:[%s3 + $0x10] sm:$0x1]
    %v324 = vlaneseq
    %v325 = vshrl.u32 %v324, 7
    %v326 = vsub.s32 0, %v325
    %v327 = vrot.slane %v323, %v326
    %v328 = vadd.f32 %v318, %v327
    %v329 = vxor.u32 %v328, 2147483648
    %v330 = vmul.f32 %v329, 1.442695
    %v331 = vpow.pop %v330
    %v332 = vadd.f32 %v331, 1.0
    %v333 = vrcp.pop %v332
    %v334 = vmul.f32 1.0, %v333
    %vm335 = vcmask 19456
    %336 = vst.msk [vmem:[#allocation2] sm:$0xf] %vm335, %v334
    // Predicated region
    $region18: #{tpu_custom_call.1} parent=1 // pred_check
      _
    $region19: #{tpu_custom_call.1} parent=1 // pred_check_branch
      %338 = sbr.rel (0) target = $region21
    $region20: #{tpu_custom_call.1} parent=1 // pred_region
      %s340 = ssub.s32 64, 64
      %341 = vsyncadd [#allocation3], %s340
      %s343 = sshll.u32 [#allocation2], 4
      %s344 = int_to_ptr.vmem [resolvable:$true] %s343
      %346 = dma.vmem_to_hbm [thread:$0]  %s344, 64, %s4, [#allocation3]
    $region21: #{tpu_custom_call.1} parent=1 // pred_fallthru
      _
    // Predicated region
    $region22: #{tpu_custom_call.1} parent=1 // pred_check
      _
    $region23: #{tpu_custom_call.1} parent=1 // pred_check_branch
      %348 = sbr.rel (0) target = $region25
    $region24: #{tpu_custom_call.1} parent=1 // pred_region
      %349 = dma.done [#allocation3], 64
    $region25: #{tpu_custom_call.1} parent=1 // pred_fallthru
      _
    %350 = vsyncpa [#allocation3], 1

</llo_original>
